<compile_context>
chip_gen: v6e
topology: v6e:2x2x1
jax: 0.10.0
libtpu: 0.0.40
codegen_flags: <defaults>
</compile_context>

<pallas_src>
import jax
import jax.numpy as jnp
from jax.experimental import pallas as pl
from jax.experimental.pallas import tpu as pltpu

_TARGET_BLOCK_BYTES = 4 << 20   # ~4 MiB per block (in + out, double-buffered = 16 MiB)
_MIN_GRID_STEPS = 8             # keep enough steps for v7x's 2 TensorCores
_COL_CANDIDATES = (2048, 1024, 512, 256, 128)  # lane-dense last dims (multiples of 128)


def _scale_kernel(scale_ref, x_ref, o_ref):
    # scale_ref: (1,1) f32 in SMEM; x_ref / o_ref: VMEM tiles.
    s = scale_ref[0, 0]
    x = x_ref[...]
    if x.dtype == o_ref.dtype and jnp.issubdtype(x.dtype, jnp.floating):
        # Same in/out dtype (f32, bf16, ...): multiply natively, no f32 round trip.
        o_ref[...] = x * s.astype(x.dtype)
    else:
        # Promoting path (e.g. bf16 x with strong f32 scale): compute in f32.
        o_ref[...] = (x.astype(jnp.float32) * s).astype(o_ref.dtype)


def my_scale_layer(x: jax.Array, scale, *, min_elements: int = 1 << 14) -> jax.Array:
    """Forward of MyScaleLayer: out = x * scale (scalar broadcast)."""
    # TODO(synk): MyScale.backward (dx = dZ*scale, dscale = dZ.mean()) is a custom
    # autograd rule; only the forward pass is implemented here.
    orig_shape = x.shape
    total = x.size

    # Fallback (no Pallas): tiny tensors (launch overhead dominates) or element
    # counts not divisible by 128 lanes.  Padding + slicing would triple HBM
    # traffic for a purely memory-bound op, so let XLA fuse the multiply.
    if total < min_elements or total % 128 != 0:
        return x * scale

    out_dtype = jnp.result_type(x, scale)

    # Lane-dense 2-D slab: largest candidate column count that divides total.
    cols = 128
    for c in _COL_CANDIDATES:
        if total % c == 0:
            cols = c
            break
    rows = total // cols
    x2d = x.reshape(rows, cols)   # reshape only — no pad, no copy-back slice

    # Row tile: ~4 MiB blocks, multiple of 8 sublanes, but keep >= ~8 grid steps
    # when the tensor is large enough (v7x megacore), and never exceed rows.
    itemsize = max(jnp.dtype(x.dtype).itemsize, jnp.dtype(out_dtype).itemsize)
    row_tile = max(8, (_TARGET_BLOCK_BYTES // (cols * itemsize)) // 8 * 8)
    if rows >= _MIN_GRID_STEPS * 8:
        per_step = max(8, (pl.cdiv(rows, _MIN_GRID_STEPS) // 8) * 8)
        row_tile = min(row_tile, per_step)
    if rows <= row_tile:
        row_tile = rows           # single full-extent block (legal for any row count)

    grid = (pl.cdiv(rows, row_tile),)   # ragged last block handled by Pallas masking

    scale_smem = jnp.asarray(scale, dtype=jnp.float32).reshape(1, 1)

    out2d = pl.pallas_call(
        _scale_kernel,
        out_shape=jax.ShapeDtypeStruct((rows, cols), out_dtype),
        grid=grid,
        in_specs=[
            pl.BlockSpec(memory_space=pltpu.MemorySpace.SMEM),      # scale (1,1)
            pl.BlockSpec((row_tile, cols), lambda i: (i, 0)),       # x tile
        ],
        out_specs=pl.BlockSpec((row_tile, cols), lambda i: (i, 0)),
        compiler_params=pltpu.CompilerParams(
            dimension_semantics=("parallel",),
            vmem_limit_bytes=40 << 20,
        ),
        cost_estimate=pl.CostEstimate(
            flops=total,
            transcendentals=0,
            bytes_accessed=total * (jnp.dtype(x.dtype).itemsize
                                    + jnp.dtype(out_dtype).itemsize),
        ),
    )(scale_smem, x2d)

    return out2d.reshape(orig_shape)


if __name__ == "__main__":
    key = jax.random.PRNGKey(0)

    # Scalar parameter (nn.Parameter(torch.tensor(initvalue))).
    scale = jnp.float32(0.5)

    # Case 1: small NCHW CIFAR-style feature map; min_elements=0 forces the
    # Pallas path (single full-extent block).
    x_small = jax.random.normal(key, (2, 4, 16, 16), dtype=jnp.float32)
    out_small = jax.block_until_ready(my_scale_layer(x_small, scale, min_elements=0))
    ref_small = x_small * scale
    assert out_small.shape == x_small.shape and out_small.dtype == x_small.dtype
    assert jnp.allclose(out_small, ref_small, atol=1e-6, rtol=1e-6)

    # Case 2: larger activation exercising the multi-step pipelined grid.
    x_big = jax.random.normal(jax.random.PRNGKey(1), (8, 64, 32, 32), dtype=jnp.float32)
    out_big = jax.block_until_ready(my_scale_layer(x_big, scale))
    ref_big = x_big * scale
    assert out_big.shape == x_big.shape and out_big.dtype == x_big.dtype
    assert jnp.allclose(out_big, ref_big, atol=1e-6, rtol=1e-6)

    print("KERNEL_OK")
</pallas_src>

<mosaic_0001>
module attributes {stable_mosaic.version = 11 : i64} {
  func.func @_scale_kernel(%arg0: i32, %arg1: memref<1x1xf32, #tpu.memory_space<smem>>, %arg2: memref<1x2048xf32, #tpu.memory_space<vmem>>, %arg3: memref<1x2048xf32, #tpu.memory_space<vmem>>) attributes {dimension_semantics = [#tpu.dimension_semantics<parallel>], iteration_bounds = array<i64: 1>, scalar_prefetch = 0 : i64, scratch_operands = 0 : i64, tpu.core_type = #tpu.core_type<tc>, window_params = [{transform_indices = @transform_0, window_bounds = array<i64: 1, 1>}, {transform_indices = @transform_1, window_bounds = array<i64: 1, 2048>}, {transform_indices = @transform_2, window_bounds = array<i64: 1, 2048>}]} {
    %c0 = arith.constant 0 : index
    %c0_0 = arith.constant 0 : index
    %0 = memref.load %arg1[%c0, %c0_0] : memref<1x1xf32, #tpu.memory_space<smem>>
    %c0_1 = arith.constant 0 : index
    %c0_2 = arith.constant 0 : index
    %1 = vector.load %arg2[%c0_1, %c0_2] : memref<1x2048xf32, #tpu.memory_space<vmem>>, vector<1x2048xf32>
    %2 = vector.broadcast %0 : f32 to vector<1x2048xf32>
    %3 = arith.mulf %1, %2 : vector<1x2048xf32>
    %c0_3 = arith.constant 0 : index
    %c0_4 = arith.constant 0 : index
    %4 = vector.load %arg3[%c0_3, %c0_4] : memref<1x2048xf32, #tpu.memory_space<vmem>>, vector<1x2048xf32>
    tpu.vector_store %arg3[%c0_3, %c0_4], %3 {strides = array<i32>} : memref<1x2048xf32, #tpu.memory_space<vmem>>, vector<1x2048xf32>,
    return
  }
  func.func @transform_0(%arg0: i32) -> (i32, i32) {
    %c0_i32 = arith.constant 0 : i32
    %c0_i32_0 = arith.constant 0 : i32
    %c0_i32_1 = arith.constant 0 : i32
    return %c0_i32, %c0_i32_0 : i32, i32
  }
  func.func @transform_1(%arg0: i32) -> (i32, i32) {
    %c0_i32 = arith.constant 0 : i32
    %c0_i32_0 = arith.constant 0 : i32
    return %arg0, %c0_i32 : i32, i32
  }
  func.func @transform_2(%arg0: i32) -> (i32, i32) {
    %c0_i32 = arith.constant 0 : i32
    %c0_i32_0 = arith.constant 0 : i32
    return %arg0, %c0_i32 : i32, i32
  }
}

</mosaic_0001>

<llo_original>
// kernel: tpu_custom_call.1
$region0: #{tpu_custom_call.1}
  #allocation0 [shape = 'u32[]', space=smem, size = 0x4, offset = 0x4, fixed_abs, tag = 'smem constant byte address 0x4 - core index']
  #allocation1 [shape = 'u32[144,128]{1,0:T(1,128)}', space=vmem, size = 0x12000, scoped, tag = 'internal scratch']
  #allocation2 [shape = 'f32[1,1]{1,0:T(1,128)S(6)}', space=smem, size = 0x200, scoped, tag = 'scoped memory for tpu_custom_call.1']
  %s0 = inlined_call_operand.<no memory space> [shape: f32[1,1], index: 0, kind: input, shape index: {}]
  %s1 = inlined_call_operand.hbm [shape: f32[1,2048], index: 1, kind: input, shape index: {}]
  %s2 = inlined_call_operand.hbm [shape: f32[1,2048], index: 2, kind: output, shape index: {}]
  %s3 = sld [smem:[#allocation0]]
  $region22: #{tpu_custom_call.1} parent=0
    _
  %s5 = ssub.s32 1, %s3
  %s6 = scalar_select 0, %s5, %s3
  %7 = sst [smem:[#allocation2]] %s0
  $region1: #{tpu_custom_call.1} parent=0
    #allocation3 [shape = 'u8[8192]{0}', space=vmem, size = 0x2000, scoped, tag = 'input window, operand 1, single buffered']
    #allocation4 [shape = 's32[1]{0}', space=sflag, size = 0x4, scoped, tag = 'scoped memory for tpu_custom_call.1']
    #allocation5 [shape = 's32[1]{0}', space=sflag, size = 0x4, scoped, tag = 'scoped memory for tpu_custom_call.1']
    #allocation6 [shape = 'u8[8192]{0}', space=vmem, size = 0x2000, scoped, tag = 'output window, operand 0, single buffered']
    %8 = vsyncpa [#allocation4], 0
    %9 = vsyncpa [#allocation5], 0
    // Predicated region
    $region2: #{tpu_custom_call.1} parent=1 // pred_check
      _
    $region3: #{tpu_custom_call.1} parent=1 // pred_check_branch
      %11 = sbr.rel (0) target = $region5
    $region4: #{tpu_custom_call.1} parent=1 // pred_region
      _
    $region5: #{tpu_custom_call.1} parent=1 // pred_fallthru
      _
    // Predicated region
    $region6: #{tpu_custom_call.1} parent=1 // pred_check
      _
    $region7: #{tpu_custom_call.1} parent=1 // pred_check_branch
      %13 = sbr.rel (0) target = $region9
    $region8: #{tpu_custom_call.1} parent=1 // pred_region
      %s15 = ssub.s32 256, 256
      %16 = vsyncadd [#allocation4], %s15
      %s18 = sshll.u32 [#allocation3], 4
      %s19 = int_to_ptr.vmem [resolvable:$true] %s18
      %21 = dma.hbm_to_vmem [thread:$0]  %s1, 256, %s19, [#allocation4]
    $region9: #{tpu_custom_call.1} parent=1 // pred_fallthru
      _
    // Predicated region
    $region10: #{tpu_custom_call.1} parent=1 // pred_check
      _
    $region11: #{tpu_custom_call.1} parent=1 // pred_check_branch
      %23 = sbr.rel (0) target = $region13
    $region12: #{tpu_custom_call.1} parent=1 // pred_region
      %24 = dma.done [#allocation4], 256
    $region13: #{tpu_custom_call.1} parent=1 // pred_fallthru
      _
    %s25 = sld [smem:[#allocation2]]
    %v26 = vld [vmem:[#allocation3] sm:$0xff]
    %v27 = vld [vmem:[#allocation3 + $0x8] sm:$0xff]
    %v28 = vstv %s25
    %v29 = vmul.f32 %v26, %v28
    %v30 = vmul.f32 %v27, %v28
    %31 = vst [vmem:[#allocation6] sm:$0xff] %v29
    %32 = vst [vmem:[#allocation6 + $0x8] sm:$0xff] %v30
    // Predicated region
    $region14: #{tpu_custom_call.1} parent=1 // pred_check
      _
    $region15: #{tpu_custom_call.1} parent=1 // pred_check_branch
      %34 = sbr.rel (0) target = $region17
    $region16: #{tpu_custom_call.1} parent=1 // pred_region
      %s36 = ssub.s32 256, 256
      %37 = vsyncadd [#allocation5], %s36
      %s39 = sshll.u32 [#allocation6], 4
      %s40 = int_to_ptr.vmem [resolvable:$true] %s39
      %42 = dma.vmem_to_hbm [thread:$0]  %s40, 256, %s2, [#allocation5]
    $region17: #{tpu_custom_call.1} parent=1 // pred_fallthru
      _
    // Predicated region
    $region18: #{tpu_custom_call.1} parent=1 // pred_check
      _
    $region19: #{tpu_custom_call.1} parent=1 // pred_check_branch
      %44 = sbr.rel (0) target = $region21
    $region20: #{tpu_custom_call.1} parent=1 // pred_region
      %45 = dma.done [#allocation5], 256
    $region21: #{tpu_custom_call.1} parent=1 // pred_fallthru
      _
    %46 = vsyncpa [#allocation4], 1
    %47 = vsyncpa [#allocation5], 1

</llo_original>
